<compile_context>
chip_gen: v7x
topology: tpu7x:2x2x1
jax: 0.10.0
libtpu: 0.0.40
codegen_flags: <defaults>
</compile_context>

<pallas_src>
import functools
import math

import jax
import jax.numpy as jnp
from jax.experimental import pallas as pl
from jax.experimental.pallas import tpu as pltpu


def _head_fc_kernel(x_ref, w_ref, ss_ref, o_ref):
    # x_ref  : (N, block_k)        bf16 flattened-activation tile
    # w_ref  : (block_k, block_e)  bf16 Linear weight tile (K x E layout)
    # ss_ref : (2, block_e)        f32 fused [scale; shift] per output channel
    # o_ref  : (N, block_e)        f32 output tile; VMEM-resident across K axis,
    #                              doubles as the accumulator (no extra scratch).
    k = pl.program_id(1)

    @pl.when(k == 0)
    def _():
        o_ref[...] = jnp.zeros_like(o_ref)

    o_ref[...] += jnp.dot(x_ref[...], w_ref[...],
                          preferred_element_type=jnp.float32)

    @pl.when(k == pl.num_programs(1) - 1)
    def _():
        ss = ss_ref[...]
        o_ref[...] = o_ref[...] * ss[0:1, :] + ss[1:2, :]


def _round_up(x, m):
    return ((x + m - 1) // m) * m


def _largest_divisor_block(dim, target, unit=128):
    """Largest multiple of `unit` that divides `dim` (itself a multiple of
    `unit`) and is <= max(target, unit)."""
    blk = min(dim, max(unit, (target // unit) * unit))
    while dim % blk:
        blk -= unit
    return blk


def _choose_blocks(n, k_pad, e_pad, *, vmem_budget=32 * 1024 * 1024):
    # E (parallel) axis: keep >= 2 blocks when possible so v7x's two
    # TensorCores both get work; prefer wide (256+) lane-dense tiles, cap 512.
    if e_pad >= 512:
        target_e = min(512, e_pad // 2)
    elif e_pad >= 256:
        target_e = e_pad // 2
    else:
        target_e = e_pad
    block_e = _largest_divisor_block(e_pad, target_e)

    # K (reduction) axis: biggest tile whose double-buffered footprint fits a
    # conservative cross-generation VMEM budget (v7x scoped default = 32 MiB).
    def footprint(bk, be):
        return (2 * bk * be * 2      # double-buffered bf16 weight tile
                + 2 * n * bk * 2     # double-buffered bf16 activation tile
                + 2 * n * be * 4     # double-buffered f32 output/acc tile
                + 2 * 2 * be * 4)    # double-buffered f32 scale/shift tile

    block_k = _largest_divisor_block(k_pad, 4096)
    while block_k > 128 and footprint(block_k, block_e) > vmem_budget:
        block_k = _largest_divisor_block(k_pad, block_k - 128)
    return block_e, block_k


def prepare_head_params(params, *, eps=1e-5):
    """One-time (offline) parameter fold / relayout / cast.

    Returns dict with
      w_t         : (K_pad, E_pad) bfloat16  Linear weight, transposed + zero-padded
      scale_shift : (2, E_pad)     float32   row0 = gamma/sqrt(var+eps)
                                             row1 = beta + (bias - mean)*row0
    """
    w = params["w"].astype(jnp.float32)                     # (E, K) torch layout
    e, k = w.shape
    k_pad = _round_up(k, 128)
    e_pad = _round_up(e, 128)

    scale = params["bn_gamma"] / jnp.sqrt(params["bn_var"] + eps)
    shift = params["bn_beta"] + (params["b"] - params["bn_mean"]) * scale
    scale_shift = jnp.stack([scale, shift]).astype(jnp.float32)        # (2, E)
    scale_shift = jnp.pad(scale_shift, ((0, 0), (0, e_pad - e)))

    w_t = jnp.pad(jnp.transpose(w), ((0, k_pad - k), (0, e_pad - e)))  # (K_pad, E_pad)
    return {"w_t": w_t.astype(jnp.bfloat16), "scale_shift": scale_shift}


@functools.partial(jax.jit, static_argnames=("emb_size",))
def head_fc_forward(x_nchw, w_t, scale_shift, *, emb_size):
    """Forward pass of Head (head='fc', eval mode).

    x_nchw      : (N, C, H, W) float32
    w_t         : (K_pad, E_pad) bfloat16 — from prepare_head_params
    scale_shift : (2, E_pad) float32      — from prepare_head_params
    returns     : (N, emb_size) float32
    """
    n = x_nchw.shape[0]
    k_dim = int(math.prod(x_nchw.shape[1:]))
    k_pad, e_pad = w_t.shape

    # Dropout(p=0) is identity; Flatten is a contiguous reshape. Cast the
    # streamed activation to bf16 (accumulation stays f32 in the kernel).
    x_flat = x_nchw.reshape(n, k_dim).astype(jnp.bfloat16)
    if k_pad != k_dim:
        x_flat = jnp.pad(x_flat, ((0, 0), (0, k_pad - k_dim)))

    block_e, block_k = _choose_blocks(n, k_pad, e_pad)
    grid = (e_pad // block_e, k_pad // block_k)   # (parallel E, reduction K last)

    out = pl.pallas_call(
        _head_fc_kernel,
        out_shape=jax.ShapeDtypeStruct((n, e_pad), jnp.float32),
        grid=grid,
        in_specs=[
            pl.BlockSpec((n, block_k), lambda j, kk: (0, kk)),
            pl.BlockSpec((block_k, block_e), lambda j, kk: (kk, j)),
            pl.BlockSpec((2, block_e), lambda j, kk: (0, j)),
        ],
        out_specs=pl.BlockSpec((n, block_e), lambda j, kk: (0, j)),
        compiler_params=pltpu.CompilerParams(
            dimension_semantics=("parallel", "arbitrary"),
            vmem_limit_bytes=48 * 1024 * 1024),
    )(x_flat, w_t, scale_shift)

    return out[:, :emb_size] if e_pad != emb_size else out


def _reference_forward(x_nchw, params, eps=1e-5):
    """Pure-JAX f32 reference (same math, no Pallas) for validation."""
    n = x_nchw.shape[0]
    x_flat = x_nchw.reshape(n, -1).astype(jnp.float32)
    y = x_flat @ params["w"].T + params["b"]
    scale = params["bn_gamma"] / jnp.sqrt(params["bn_var"] + eps)
    return (y - params["bn_mean"]) * scale + params["bn_beta"]


if __name__ == "__main__":
    # Small shapes consistent with Head(feat_size=16, inplanes=4, emb_size=256):
    # x is (N, C, H, W) = (2, 4, 16, 16) -> flattened K = 1024, emb = 256.
    N, C, H, W = 2, 4, 16, 16
    K = C * H * W
    EMB = 256

    key = jax.random.PRNGKey(0)
    ks = jax.random.split(key, 7)
    x = jax.random.normal(ks[0], (N, C, H, W), jnp.float32)

    params = {
        # nn.Linear(K, EMB): weight (EMB, K) [xavier-ish scale], bias (EMB,)
        "w": jax.random.normal(ks[1], (EMB, K), jnp.float32) * 0.03,
        "b": jax.random.normal(ks[2], (EMB,), jnp.float32) * 0.1,
        # nn.BatchNorm1d(EMB) eval-mode parameters / running statistics
        "bn_gamma": jax.random.normal(ks[3], (EMB,), jnp.float32) * 0.1 + 1.0,
        "bn_beta": jax.random.normal(ks[4], (EMB,), jnp.float32) * 0.1,
        "bn_mean": jax.random.normal(ks[5], (EMB,), jnp.float32) * 0.1,
        "bn_var": jax.random.uniform(ks[6], (EMB,), jnp.float32, 0.5, 1.5),
    }

    # One-time fold / relayout / cast (outside the per-call jitted forward).
    prepared = prepare_head_params(params)
    prepared = {k_: jax.block_until_ready(v) for k_, v in prepared.items()}

    out = jax.block_until_ready(
        head_fc_forward(x, prepared["w_t"], prepared["scale_shift"],
                        emb_size=EMB))

    ref = jax.block_until_ready(_reference_forward(x, params))
    assert out.shape == (N, EMB)
    # bf16 operand stream with f32 accumulation vs a pure-f32 reference.
    assert jnp.allclose(out, ref, atol=5e-2, rtol=5e-2), "mismatch vs reference"

    print("KERNEL_OK")
</pallas_src>

<mosaic_0001>
module attributes {stable_mosaic.version = 11 : i64} {
  func.func @_head_fc_kernel(%arg0: i32, %arg1: i32, %arg2: memref<2x1024xbf16, #tpu.memory_space<vmem>>, %arg3: memref<1024x128xbf16, #tpu.memory_space<vmem>>, %arg4: memref<2x128xf32, #tpu.memory_space<vmem>>, %arg5: memref<2x128xf32, #tpu.memory_space<vmem>>) attributes {dimension_semantics = [#tpu.dimension_semantics<parallel>, #tpu.dimension_semantics<arbitrary>], iteration_bounds = array<i64: 2, 1>, scalar_prefetch = 0 : i64, scratch_operands = 0 : i64, tpu.core_type = #tpu.core_type<tc>, window_params = [{transform_indices = @transform_0, window_bounds = array<i64: 2, 1024>}, {transform_indices = @transform_1, window_bounds = array<i64: 1024, 128>}, {transform_indices = @transform_2, window_bounds = array<i64: 2, 128>}, {transform_indices = @transform_3, window_bounds = array<i64: 2, 128>}]} {
    %c0_i32 = arith.constant 0 : i32
    %0 = arith.cmpi eq, %arg1, %c0_i32 : i32
    %1 = arith.extui %0 : i1 to i32
    %c0_i32_0 = arith.constant 0 : i32
    %2 = arith.cmpi ne, %1, %c0_i32_0 : i32
    scf.if %2 {
      %cst_10 = arith.constant 0.000000e+00 : f32
      %12 = vector.broadcast %cst_10 : f32 to vector<2x128xf32>
      %c0_11 = arith.constant 0 : index
      %c0_12 = arith.constant 0 : index
      %13 = vector.load %arg5[%c0_11, %c0_12] : memref<2x128xf32, #tpu.memory_space<vmem>>, vector<2x128xf32>
      tpu.vector_store %arg5[%c0_11, %c0_12], %12 {strides = array<i32>} : memref<2x128xf32, #tpu.memory_space<vmem>>, vector<2x128xf32>,
    } else {
    }
    %c0 = arith.constant 0 : index
    %c0_1 = arith.constant 0 : index
    %3 = vector.load %arg5[%c0, %c0_1] : memref<2x128xf32, #tpu.memory_space<vmem>>, vector<2x128xf32>
    %c0_2 = arith.constant 0 : index
    %c0_3 = arith.constant 0 : index
    %4 = vector.load %arg2[%c0_2, %c0_3] : memref<2x1024xbf16, #tpu.memory_space<vmem>>, vector<2x1024xbf16>
    %c0_4 = arith.constant 0 : index
    %c0_5 = arith.constant 0 : index
    %5 = vector.load %arg3[%c0_4, %c0_5] : memref<1024x128xbf16, #tpu.memory_space<vmem>>, vector<1024x128xbf16>
    %cst = arith.constant dense<0.000000e+00> : vector<2x128xf32>
    %6 = tpu.matmul %4, %5, %cst {dimension_numbers = #tpu.dot_dimension_numbers<[1], [0], [0], [1], [0, 0, 1, 1], [], []>} : vector<2x1024xbf16>, vector<1024x128xbf16>, vector<2x128xf32> -> vector<2x128xf32>
    %7 = arith.addf %3, %6 : vector<2x128xf32>
    %c0_6 = arith.constant 0 : index
    %c0_7 = arith.constant 0 : index
    %8 = vector.load %arg5[%c0_6, %c0_7] : memref<2x128xf32, #tpu.memory_space<vmem>>, vector<2x128xf32>
    tpu.vector_store %arg5[%c0_6, %c0_7], %7 {strides = array<i32>} : memref<2x128xf32, #tpu.memory_space<vmem>>, vector<2x128xf32>,
    %c0_i32_8 = arith.constant 0 : i32
    %9 = arith.cmpi eq, %arg1, %c0_i32_8 : i32
    %10 = arith.extui %9 : i1 to i32
    %c0_i32_9 = arith.constant 0 : i32
    %11 = arith.cmpi ne, %10, %c0_i32_9 : i32
    scf.if %11 {
      %c0_10 = arith.constant 0 : index
      %c0_11 = arith.constant 0 : index
      %12 = vector.load %arg4[%c0_10, %c0_11] : memref<2x128xf32, #tpu.memory_space<vmem>>, vector<2x128xf32>
      %c0_12 = arith.constant 0 : index
      %c0_13 = arith.constant 0 : index
      %13 = vector.load %arg5[%c0_12, %c0_13] : memref<2x128xf32, #tpu.memory_space<vmem>>, vector<2x128xf32>
      %14 = vector.extract_strided_slice %12 {offsets = [0, 0], sizes = [1, 128], strides = [1, 1]} : vector<2x128xf32> to vector<1x128xf32>
      %15 = vector.broadcast %14 : vector<1x128xf32> to vector<2x128xf32>
      %16 = arith.mulf %13, %15 : vector<2x128xf32>
      %17 = vector.extract_strided_slice %12 {offsets = [1, 0], sizes = [1, 128], strides = [1, 1]} : vector<2x128xf32> to vector<1x128xf32>
      %18 = vector.broadcast %17 : vector<1x128xf32> to vector<2x128xf32>
      %19 = arith.addf %16, %18 : vector<2x128xf32>
      %c0_14 = arith.constant 0 : index
      %c0_15 = arith.constant 0 : index
      %20 = vector.load %arg5[%c0_14, %c0_15] : memref<2x128xf32, #tpu.memory_space<vmem>>, vector<2x128xf32>
      tpu.vector_store %arg5[%c0_14, %c0_15], %19 {strides = array<i32>} : memref<2x128xf32, #tpu.memory_space<vmem>>, vector<2x128xf32>,
    } else {
    }
    return
  }
  func.func @transform_0(%arg0: i32, %arg1: i32) -> (i32, i32) {
    %c0_i32 = arith.constant 0 : i32
    %c0_i32_0 = arith.constant 0 : i32
    return %c0_i32, %arg1 : i32, i32
  }
  func.func @transform_1(%arg0: i32, %arg1: i32) -> (i32, i32) {
    %c0_i32 = arith.constant 0 : i32
    return %arg1, %arg0 : i32, i32
  }
  func.func @transform_2(%arg0: i32, %arg1: i32) -> (i32, i32) {
    %c0_i32 = arith.constant 0 : i32
    %c0_i32_0 = arith.constant 0 : i32
    return %c0_i32, %arg0 : i32, i32
  }
  func.func @transform_3(%arg0: i32, %arg1: i32) -> (i32, i32) {
    %c0_i32 = arith.constant 0 : i32
    %c0_i32_0 = arith.constant 0 : i32
    return %c0_i32, %arg0 : i32, i32
  }
}

</mosaic_0001>

<llo_original>
// kernel: head_fc_forward.1
$region0: #{head_fc_forward.1}
  #allocation0 [shape = 'u32[]', space=smem, size = 0x4, offset = 0x4, fixed_abs, tag = 'smem constant byte address 0x4 - core index']
  #allocation1 [shape = 'u32[144,128]{1,0:T(1,128)}', space=vmem, size = 0x12000, scoped, tag = 'internal scratch']
  %s0 = inlined_call_operand.vmem [shape: bf16[2,1024], index: 0, kind: input, shape index: {}]
  %s1 = inlined_call_operand.hbm [shape: bf16[1024,256], index: 1, kind: input, shape index: {}]
  %s2 = inlined_call_operand.vmem [shape: f32[2,256], index: 2, kind: input, shape index: {}]
  %s3 = inlined_call_operand.hbm [shape: f32[2,256], index: 3, kind: output, shape index: {}]
  %s4 = sld [smem:[#allocation0]]
  $region57: #{head_fc_forward.1} parent=0
    _
  %s6 = ssub.s32 1, %s4
  %s7 = scalar_select 0, %s6, %s4
  $region1: #{head_fc_forward.1} parent=0
    #allocation2 [shape = 'u8[524288]{0}', space=vmem, size = 0x80000, scoped, tag = 'input window, operand 1']
    #allocation3 [shape = 's32[2]{0}', space=sflag, size = 0x8, scoped, tag = 'scoped memory for head_fc_forward.1']
    #allocation4 [shape = 's32[2]{0}', space=sflag, size = 0x8, scoped, tag = 'scoped memory for head_fc_forward.1']
    #allocation5 [shape = 'u8[2048]{0}', space=vmem, size = 0x800, scoped, tag = 'output window, operand 0']
    %8 = vsyncpa [#allocation3], 0
    %s9 = scalar_lea.sflag [#allocation3], 1
    %10 = vsyncpa %s9, 0
    %11 = vsyncpa [#allocation4], 0
    %s12 = scalar_lea.sflag [#allocation4], 1
    %13 = vsyncpa %s12, 0
    loop: start=0, step=1, limit=4
    $region2: #{head_fc_forward.1} parent=1 // loop_pre_header
      _
    $region3: #{head_fc_forward.1} parent=1 // loop_header
      %s15 = sphi 0, %s19
      %p16 = scmp.ge.s32.totalorder %s15, 4
      %s22 = sphi 0, %s34
      %s23 = sphi 0, %s30
      %s24 = sphi 0, %s22
      %s25 = sphi 0, %s23
      %s26 = sphi 0, %s24
      %s27 = sphi 0, %s25
      %s37 = sphi 0, %s39
      %s40 = sphi 0, %s37
      %s41 = sphi 0, %s40
      %s57 = sphi 0, %s41
      %s65 = sphi 0, %s67
      %s68 = sphi 0, %s65
      %s69 = sphi 0, %s68
      %s85 = sphi 0, %s69
      %s91 = sphi 0, %s93
      %s94 = sphi 0, %s91
      %s95 = sphi 0, %s94
      %s111 = sphi 0, %s95
      %s117 = sphi 0, %s119
      %s120 = sphi 0, %s117
      %s121 = sphi 0, %s120
      %s137 = sphi 0, %s121
    $region4: #{head_fc_forward.1} parent=1 // loop_header_branch
      %18 = sbr.rel (%p16) target = $region8
    $region5: #{head_fc_forward.1} parent=1 // loop_body
      %s20 = ssub.s32 %s15, 1
      %s21 = ssub.s32 %s15, 2
      %s28 = sadd.s32 1, %s23
      %p29 = scmp.ge.s32.totalorder %s28, 1
      %s30 = scalar_select %p29, 0, %s28
      %s31 = sadd.s32 1, %s22
      %s32 = scalar_select %p29, %s31, %s22
      %p33 = scmp.ge.s32.totalorder %s32, 2
      %s34 = scalar_select %p33, 0, %s32
      %s35 = ssub.s32 %s23, %s30
      %p36 = scmp.eq.s32.totalorder %s35, 0
      %s38 = sadd.s32 %s37, 1
      %s39 = scalar_select %p36, %s37, %s38
      %p42 = pneg %p36
      %p43 = scmp.eq.s32.totalorder %s15, 1
      %p44 = por %p42, %p43
      %p45 = scmp.ne.s32.totalorder %s37, %s40
      %p46 = scmp.eq.s32.totalorder %s15, 0
      %p47 = por %p45, %p46
      %p48 = scmp.ne.s32.totalorder %s37, %s40
      %p49 = scmp.eq.s32.totalorder %s20, 1
      %p50 = por %p48, %p49
      %p51 = scmp.ne.s32.totalorder %s40, %s41
      %p52 = scmp.eq.s32.totalorder %s20, 0
      %p53 = por %p51, %p52
      %p54 = scmp.ne.s32.totalorder %s40, %s41
      %p55 = scmp.eq.s32.totalorder %s21, 1
      %p56 = por %p54, %p55
      %p58 = scmp.ne.s32.totalorder %s41, %s57
      %p59 = scmp.eq.s32.totalorder %s21, 0
      %p60 = por %p58, %p59
      %s61 = ssub.s32 %s23, %s30
      %s62 = ssub.s32 %s22, %s34
      %s63 = sor.u32 %s61, %s62
      %p64 = scmp.eq.s32.totalorder %s63, 0
      %s66 = sadd.s32 %s65, 1
      %s67 = scalar_select %p64, %s65, %s66
      %p70 = pneg %p64
      %p71 = scmp.eq.s32.totalorder %s15, 1
      %p72 = por %p70, %p71
      %p73 = scmp.ne.s32.totalorder %s65, %s68
      %p74 = scmp.eq.s32.totalorder %s15, 0
      %p75 = por %p73, %p74
      %p76 = scmp.ne.s32.totalorder %s65, %s68
      %p77 = scmp.eq.s32.totalorder %s20, 1
      %p78 = por %p76, %p77
      %p79 = scmp.ne.s32.totalorder %s68, %s69
      %p80 = scmp.eq.s32.totalorder %s20, 0
      %p81 = por %p79, %p80
      %p82 = scmp.ne.s32.totalorder %s68, %s69
      %p83 = scmp.eq.s32.totalorder %s21, 1
      %p84 = por %p82, %p83
      %p86 = scmp.ne.s32.totalorder %s69, %s85
      %p87 = scmp.eq.s32.totalorder %s21, 0
      %p88 = por %p86, %p87
      %s89 = ssub.s32 %s22, %s34
      %p90 = scmp.eq.s32.totalorder %s89, 0
      %s92 = sadd.s32 %s91, 1
      %s93 = scalar_select %p90, %s91, %s92
      %p96 = pneg %p90
      %p97 = scmp.eq.s32.totalorder %s15, 1
      %p98 = por %p96, %p97
      %p99 = scmp.ne.s32.totalorder %s91, %s94
      %p100 = scmp.eq.s32.totalorder %s15, 0
      %p101 = por %p99, %p100
      %p102 = scmp.ne.s32.totalorder %s91, %s94
      %p103 = scmp.eq.s32.totalorder %s20, 1
      %p104 = por %p102, %p103
      %p105 = scmp.ne.s32.totalorder %s94, %s95
      %p106 = scmp.eq.s32.totalorder %s20, 0
      %p107 = por %p105, %p106
      %p108 = scmp.ne.s32.totalorder %s94, %s95
      %p109 = scmp.eq.s32.totalorder %s21, 1
      %p110 = por %p108, %p109
      %p112 = scmp.ne.s32.totalorder %s95, %s111
      %p113 = scmp.eq.s32.totalorder %s21, 0
      %p114 = por %p112, %p113
      %s115 = ssub.s32 %s22, %s34
      %p116 = scmp.eq.s32.totalorder %s115, 0
      %s118 = sadd.s32 %s117, 1
      %s119 = scalar_select %p116, %s117, %s118
      %p122 = pneg %p116
      %p123 = scmp.eq.s32.totalorder %s15, 1
      %p124 = por %p122, %p123
      %p125 = scmp.ne.s32.totalorder %s117, %s120
      %p126 = scmp.eq.s32.totalorder %s15, 0
      %p127 = por %p125, %p126
      %p128 = scmp.ne.s32.totalorder %s117, %s120
      %p129 = scmp.eq.s32.totalorder %s20, 1
      %p130 = por %p128, %p129
      %p131 = scmp.ne.s32.totalorder %s120, %s121
      %p132 = scmp.eq.s32.totalorder %s20, 0
      %p133 = por %p131, %p132
      %p134 = scmp.ne.s32.totalorder %s120, %s121
      %p135 = scmp.eq.s32.totalorder %s21, 1
      %p136 = por %p134, %p135
      %p138 = scmp.ne.s32.totalorder %s121, %s137
      %p139 = scmp.eq.s32.totalorder %s21, 0
      %p140 = por %p138, %p139
      %p141 = scmp.le.s32.totalorder 1, %s15
      %p142 = scmp.lt.s32.totalorder %s15, 3
      %p143 = pnand %p141, %p142
      %p144 = pneg %p143
      // Predicated region
      $region9: #{head_fc_forward.1} parent=5 // pred_check
        _
      $region10: #{head_fc_forward.1} parent=5 // pred_check_branch
        %146 = sbr.rel (%p143) target = $region12
      $region11: #{head_fc_forward.1} parent=5 // pred_region
        %s147 = ssub.s32 %s15, 1
        // Predicated region
        $region13: #{head_fc_forward.1} parent=11 // pred_check
          %p148 = pneg %p53
        $region14: #{head_fc_forward.1} parent=11 // pred_check_branch
          %150 = sbr.rel (%p148) target = $region16
        $region15: #{head_fc_forward.1} parent=11 // pred_region
          %s151 = smul.u32 8, %s25
          %p152 = scmp.lt.s32.totalorder %s151, 7
          %s153 = scalar_select %p152, %s151, 7
          %s154 = scalar_lea.vmem %s0, %s153
          %s155 = smul.u32 8, %s25
        $region16: #{head_fc_forward.1} parent=11 // pred_fallthru
          _
      $region12: #{head_fc_forward.1} parent=5 // pred_fallthru
        _
      %p156 = scmp.lt.s32.totalorder %s15, 2
      // Predicated region
      $region17: #{head_fc_forward.1} parent=5 // pred_check
        %p157 = pneg %p156
      $region18: #{head_fc_forward.1} parent=5 // pred_check_branch
        %159 = sbr.rel (%p157) target = $region20
      $region19: #{head_fc_forward.1} parent=5 // pred_region
        // Predicated region
        $region21: #{head_fc_forward.1} parent=19 // pred_check
          %p160 = pneg %p75
        $region22: #{head_fc_forward.1} parent=19 // pred_check_branch
          %162 = sbr.rel (%p160) target = $region24
        $region23: #{head_fc_forward.1} parent=19 // pred_region
          %s163 = sand.u32 %s65, 1
          %s164 = scalar_lea.sflag [#allocation3], %s163
          %s165 = sand.u32 %s65, 1
          %s166 = smul.addr %s165, 512
          %s167 = scalar_lea.vmem [#allocation2], %s166
          %s168 = smul.u32 128, %s23
          %s170 = ssub.s32 8192, 8192
          %171 = vsyncadd %s164, %s170
          %s172 = smul.addr %s168, 2
          %s173 = sadd.s32 %s22, %s172
          %s174 = smul.addr %s173, 64
          %s175 = scalar_lea.hbm %s1, %s174
          %s176 = sshll.u32 %s167, 4
          %s177 = int_to_ptr.vmem [resolvable:$true] %s176
          %182 = dma.hbm_to_vmem [thread:$0]  %s175, 8192, %s177, %s164, 128, 64, 4
        $region24: #{head_fc_forward.1} parent=19 // pred_fallthru
          _
        // Predicated region
        $region25: #{head_fc_forward.1} parent=19 // pred_check
          %p183 = pneg %p101
        $region26: #{head_fc_forward.1} parent=19 // pred_check_branch
          %185 = sbr.rel (%p183) target = $region28
        $region27: #{head_fc_forward.1} parent=19 // pred_region
          %p186 = scmp.lt.s32.totalorder %s22, 1
          %s187 = scalar_select %p186, %s22, 1
          %s188 = smul.addr %s187, 2
          %s189 = scalar_lea.vmem %s2, %s188
        $region28: #{head_fc_forward.1} parent=19 // pred_fallthru
          _
      $region20: #{head_fc_forward.1} parent=5 // pred_fallthru
        _
      %p190 = scmp.le.s32.totalorder 1, %s15
      %p191 = scmp.lt.s32.totalorder %s15, 3
      %p192 = pnand %p190, %p191
      %p193 = pneg %p192
      // Predicated region
      $region29: #{head_fc_forward.1} parent=5 // pred_check
        _
      $region30: #{head_fc_forward.1} parent=5 // pred_check_branch
        %195 = sbr.rel (%p192) target = $region32
      $region31: #{head_fc_forward.1} parent=5 // pred_region
        %s196 = ssub.s32 %s15, 1
        %s197 = sand.u32 %s68, 1
        %s198 = scalar_lea.sflag [#allocation3], %s197
        %s199 = sand.u32 %s68, 1
        %s200 = smul.addr %s199, 512
        %s201 = scalar_lea.vmem [#allocation2], %s200
        // Predicated region
        $region33: #{head_fc_forward.1} parent=31 // pred_check
          %p202 = pneg %p81
        $region34: #{head_fc_forward.1} parent=31 // pred_check_branch
          %204 = sbr.rel (%p202) target = $region36
        $region35: #{head_fc_forward.1} parent=31 // pred_region
          %205 = dma.done %s198, 8192
        $region36: #{head_fc_forward.1} parent=31 // pred_fallthru
          _
        %s206 = smul.u32 8, %s25
        %p207 = scmp.lt.s32.totalorder %s206, 7
        %s208 = scalar_select %p207, %s206, 7
        %s209 = scalar_lea.vmem %s0, %s208
        %p210 = pneg %p53
        %p211 = pneg %p50
        %s212 = sand.u32 %s68, 1
        %s213 = scalar_lea.sflag [#allocation3], %s212
        %s214 = sand.u32 %s68, 1
        %s215 = smul.addr %s214, 512
        %s216 = scalar_lea.vmem [#allocation2], %s215
        %p217 = pneg %p81
        %p218 = pneg %p78
        %p219 = scmp.lt.s32.totalorder %s24, 1
        %s220 = scalar_select %p219, %s24, 1
        %s221 = smul.addr %s220, 2
        %s222 = scalar_lea.vmem %s2, %s221
        %p223 = pneg %p107
        %p224 = pneg %p104
        %p225 = pneg %p133
        %p226 = pneg %p130
        %s227 = sand.u32 %s120, 1
        %s228 = scalar_lea.sflag [#allocation4], %s227
        %s229 = sand.u32 %s120, 1
        %s230 = smul.addr %s229, 2
        %s231 = scalar_lea.vmem [#allocation5], %s230
        %s232 = smul.u32 8, %s25
        %p233 = scmp.lt.s32.totalorder %s232, 7
        %s234 = scalar_select %p233, %s232, 7
        %s235 = scalar_lea.vmem %s0, %s234
        %s236 = smul.u32 8, %s25
        %s237 = smul.u32 128, %s25
        %p238 = scmp.lt.s32.totalorder %s24, 1
        %s239 = scalar_select %p238, %s24, 1
        %s240 = smul.addr %s239, 2
        %s241 = scalar_lea.vmem %s2, %s240
        %p243 = scmp.eq.s32.totalorder %s25, 0
        // Predicated region
        $region37: #{head_fc_forward.1} parent=31 // pred_check
          %p244 = pneg %p243
        $region38: #{head_fc_forward.1} parent=31 // pred_check_branch
          %246 = sbr.rel (%p244) target = $region40
        $region39: #{head_fc_forward.1} parent=31 // pred_region
          %247 = vst [vmem:[%s231] sm:$0x3] 0.0
        $region40: #{head_fc_forward.1} parent=31 // pred_fallthru
          _
        %v248 = vld [vmem:[%s231] sm:$0x3]
        %v249 = vld [vmem:[%s235] sm:$0xff]
        %v250 = vld [vmem:[%s201] sm:$0xf]
        %v251 = vld [vmem:[%s201 + $0x4] sm:$0xf]
        %v252 = vld [vmem:[%s201 + $0x8] sm:$0xf]
        %v253 = vld [vmem:[%s201 + $0xc] sm:$0xf]
        %v254 = vld [vmem:[%s201 + $0x10] sm:$0xf]
        %v255 = vld [vmem:[%s201 + $0x14] sm:$0xf]
        %v256 = vld [vmem:[%s201 + $0x18] sm:$0xf]
        %v257 = vld [vmem:[%s201 + $0x1c] sm:$0xf]
        %v258 = vld [vmem:[%s201 + $0x20] sm:$0xf]
        %v259 = vld [vmem:[%s201 + $0x24] sm:$0xf]
        %v260 = vld [vmem:[%s201 + $0x28] sm:$0xf]
        %v261 = vld [vmem:[%s201 + $0x2c] sm:$0xf]
        %v262 = vld [vmem:[%s201 + $0x30] sm:$0xf]
        %v263 = vld [vmem:[%s201 + $0x34] sm:$0xf]
        %v264 = vld [vmem:[%s201 + $0x38] sm:$0xf]
        %v265 = vld [vmem:[%s201 + $0x3c] sm:$0xf]
        %v266 = vld [vmem:[%s201 + $0x40] sm:$0xf]
        %v267 = vld [vmem:[%s201 + $0x44] sm:$0xf]
        %v268 = vld [vmem:[%s201 + $0x48] sm:$0xf]
        %v269 = vld [vmem:[%s201 + $0x4c] sm:$0xf]
        %v270 = vld [vmem:[%s201 + $0x50] sm:$0xf]
        %v271 = vld [vmem:[%s201 + $0x54] sm:$0xf]
        %v272 = vld [vmem:[%s201 + $0x58] sm:$0xf]
        %v273 = vld [vmem:[%s201 + $0x5c] sm:$0xf]
        %v274 = vld [vmem:[%s201 + $0x60] sm:$0xf]
        %v275 = vld [vmem:[%s201 + $0x64] sm:$0xf]
        %v276 = vld [vmem:[%s201 + $0x68] sm:$0xf]
        %v277 = vld [vmem:[%s201 + $0x6c] sm:$0xf]
        %v278 = vld [vmem:[%s201 + $0x70] sm:$0xf]
        %v279 = vld [vmem:[%s201 + $0x74] sm:$0xf]
        %v280 = vld [vmem:[%s201 + $0x78] sm:$0xf]
        %v281 = vld [vmem:[%s201 + $0x7c] sm:$0xf]
        %v282 = vld [vmem:[%s201 + $0x80] sm:$0xf]
        %v283 = vld [vmem:[%s201 + $0x84] sm:$0xf]
        %v284 = vld [vmem:[%s201 + $0x88] sm:$0xf]
        %v285 = vld [vmem:[%s201 + $0x8c] sm:$0xf]
        %v286 = vld [vmem:[%s201 + $0x90] sm:$0xf]
        %v287 = vld [vmem:[%s201 + $0x94] sm:$0xf]
        %v288 = vld [vmem:[%s201 + $0x98] sm:$0xf]
        %v289 = vld [vmem:[%s201 + $0x9c] sm:$0xf]
        %v290 = vld [vmem:[%s201 + $0xa0] sm:$0xf]
        %v291 = vld [vmem:[%s201 + $0xa4] sm:$0xf]
        %v292 = vld [vmem:[%s201 + $0xa8] sm:$0xf]
        %v293 = vld [vmem:[%s201 + $0xac] sm:$0xf]
        %v294 = vld [vmem:[%s201 + $0xb0] sm:$0xf]
        %v295 = vld [vmem:[%s201 + $0xb4] sm:$0xf]
        %v296 = vld [vmem:[%s201 + $0xb8] sm:$0xf]
        %v297 = vld [vmem:[%s201 + $0xbc] sm:$0xf]
        %v298 = vld [vmem:[%s201 + $0xc0] sm:$0xf]
        %v299 = vld [vmem:[%s201 + $0xc4] sm:$0xf]
        %v300 = vld [vmem:[%s201 + $0xc8] sm:$0xf]
        %v301 = vld [vmem:[%s201 + $0xcc] sm:$0xf]
        %v302 = vld [vmem:[%s201 + $0xd0] sm:$0xf]
        %v303 = vld [vmem:[%s201 + $0xd4] sm:$0xf]
        %v304 = vld [vmem:[%s201 + $0xd8] sm:$0xf]
        %v305 = vld [vmem:[%s201 + $0xdc] sm:$0xf]
        %v306 = vld [vmem:[%s201 + $0xe0] sm:$0xf]
        %v307 = vld [vmem:[%s201 + $0xe4] sm:$0xf]
        %v308 = vld [vmem:[%s201 + $0xe8] sm:$0xf]
        %v309 = vld [vmem:[%s201 + $0xec] sm:$0xf]
        %v310 = vld [vmem:[%s201 + $0xf0] sm:$0xf]
        %v311 = vld [vmem:[%s201 + $0xf4] sm:$0xf]
        %v312 = vld [vmem:[%s201 + $0xf8] sm:$0xf]
        %v313 = vld [vmem:[%s201 + $0xfc] sm:$0xf]
        %v314 = vld [vmem:[%s201 + $0x100] sm:$0xf]
        %v315 = vld [vmem:[%s201 + $0x104] sm:$0xf]
        %v316 = vld [vmem:[%s201 + $0x108] sm:$0xf]
        %v317 = vld [vmem:[%s201 + $0x10c] sm:$0xf]
        %v318 = vld [vmem:[%s201 + $0x110] sm:$0xf]
        %v319 = vld [vmem:[%s201 + $0x114] sm:$0xf]
        %v320 = vld [vmem:[%s201 + $0x118] sm:$0xf]
        %v321 = vld [vmem:[%s201 + $0x11c] sm:$0xf]
        %v322 = vld [vmem:[%s201 + $0x120] sm:$0xf]
        %v323 = vld [vmem:[%s201 + $0x124] sm:$0xf]
        %v324 = vld [vmem:[%s201 + $0x128] sm:$0xf]
        %v325 = vld [vmem:[%s201 + $0x12c] sm:$0xf]
        %v326 = vld [vmem:[%s201 + $0x130] sm:$0xf]
        %v327 = vld [vmem:[%s201 + $0x134] sm:$0xf]
        %v328 = vld [vmem:[%s201 + $0x138] sm:$0xf]
        %v329 = vld [vmem:[%s201 + $0x13c] sm:$0xf]
        %v330 = vld [vmem:[%s201 + $0x140] sm:$0xf]
        %v331 = vld [vmem:[%s201 + $0x144] sm:$0xf]
        %v332 = vld [vmem:[%s201 + $0x148] sm:$0xf]
        %v333 = vld [vmem:[%s201 + $0x14c] sm:$0xf]
        %v334 = vld [vmem:[%s201 + $0x150] sm:$0xf]
        %v335 = vld [vmem:[%s201 + $0x154] sm:$0xf]
        %v336 = vld [vmem:[%s201 + $0x158] sm:$0xf]
        %v337 = vld [vmem:[%s201 + $0x15c] sm:$0xf]
        %v338 = vld [vmem:[%s201 + $0x160] sm:$0xf]
        %v339 = vld [vmem:[%s201 + $0x164] sm:$0xf]
        %v340 = vld [vmem:[%s201 + $0x168] sm:$0xf]
        %v341 = vld [vmem:[%s201 + $0x16c] sm:$0xf]
        %v342 = vld [vmem:[%s201 + $0x170] sm:$0xf]
        %v343 = vld [vmem:[%s201 + $0x174] sm:$0xf]
        %v344 = vld [vmem:[%s201 + $0x178] sm:$0xf]
        %v345 = vld [vmem:[%s201 + $0x17c] sm:$0xf]
        %v346 = vld [vmem:[%s201 + $0x180] sm:$0xf]
        %v347 = vld [vmem:[%s201 + $0x184] sm:$0xf]
        %v348 = vld [vmem:[%s201 + $0x188] sm:$0xf]
        %v349 = vld [vmem:[%s201 + $0x18c] sm:$0xf]
        %v350 = vld [vmem:[%s201 + $0x190] sm:$0xf]
        %v351 = vld [vmem:[%s201 + $0x194] sm:$0xf]
        %v352 = vld [vmem:[%s201 + $0x198] sm:$0xf]
        %v353 = vld [vmem:[%s201 + $0x19c] sm:$0xf]
        %v354 = vld [vmem:[%s201 + $0x1a0] sm:$0xf]
        %v355 = vld [vmem:[%s201 + $0x1a4] sm:$0xf]
        %v356 = vld [vmem:[%s201 + $0x1a8] sm:$0xf]
        %v357 = vld [vmem:[%s201 + $0x1ac] sm:$0xf]
        %v358 = vld [vmem:[%s201 + $0x1b0] sm:$0xf]
        %v359 = vld [vmem:[%s201 + $0x1b4] sm:$0xf]
        %v360 = vld [vmem:[%s201 + $0x1b8] sm:$0xf]
        %v361 = vld [vmem:[%s201 + $0x1bc] sm:$0xf]
        %v362 = vld [vmem:[%s201 + $0x1c0] sm:$0xf]
        %v363 = vld [vmem:[%s201 + $0x1c4] sm:$0xf]
        %v364 = vld [vmem:[%s201 + $0x1c8] sm:$0xf]
        %v365 = vld [vmem:[%s201 + $0x1cc] sm:$0xf]
        %v366 = vld [vmem:[%s201 + $0x1d0] sm:$0xf]
        %v367 = vld [vmem:[%s201 + $0x1d4] sm:$0xf]
        %v368 = vld [vmem:[%s201 + $0x1d8] sm:$0xf]
        %v369 = vld [vmem:[%s201 + $0x1dc] sm:$0xf]
        %v370 = vld [vmem:[%s201 + $0x1e0] sm:$0xf]
        %v371 = vld [vmem:[%s201 + $0x1e4] sm:$0xf]
        %v372 = vld [vmem:[%s201 + $0x1e8] sm:$0xf]
        %v373 = vld [vmem:[%s201 + $0x1ec] sm:$0xf]
        %v374 = vld [vmem:[%s201 + $0x1f0] sm:$0xf]
        %v375 = vld [vmem:[%s201 + $0x1f4] sm:$0xf]
        %v376 = vld [vmem:[%s201 + $0x1f8] sm:$0xf]
        %v377 = vld [vmem:[%s201 + $0x1fc] sm:$0xf]
        %v379 = vcombine.high %v249, %v249
        %v381 = vunpack.c.l.s4 1966171168
        %v382 = vunpack.c.0.s8 %v381
        %v383 = vlaneseq
        %v384 = vshrl.u32 %v383, 7
        %v385 = vsub.s32 %v382, %v384
        %v386 = vrot.slane %v249, %v385
        %v388 = vunpack.c.l.s4 1966171168
        %v389 = vunpack.c.0.s8 %v388
        %v390 = vlaneseq
        %v391 = vshrl.u32 %v390, 7
        %v392 = vsub.s32 %v389, %v391
        %v393 = vrot.slane %v379, %v392
        %v394 = vcombine.high %v386, %v386
        %v395 = vcombine.high %v393, %v393
        %v397 = vunpack.c.l.s4 1966171168
        %v398 = vunpack.c.0.s8 %v397
        %v399 = vlaneseq
        %v400 = vshrl.u32 %v399, 7
        %v401 = vsub.s32 %v398, %v400
        %v402 = vrot.slane %v386, %v401
        %v404 = vunpack.c.l.s4 1966171168
        %v405 = vunpack.c.0.s8 %v404
        %v406 = vlaneseq
        %v407 = vshrl.u32 %v406, 7
        %v408 = vsub.s32 %v405, %v407
        %v409 = vrot.slane %v393, %v408
        %v411 = vunpack.c.l.s4 1966171168
        %v412 = vunpack.c.0.s8 %v411
        %v413 = vlaneseq
        %v414 = vshrl.u32 %v413, 7
        %v415 = vsub.s32 %v412, %v414
        %v416 = vrot.slane %v394, %v415
        %v418 = vunpack.c.l.s4 1966171168
        %v419 = vunpack.c.0.s8 %v418
        %v420 = vlaneseq
        %v421 = vshrl.u32 %v420, 7
        %v422 = vsub.s32 %v419, %v421
        %v423 = vrot.slane %v395, %v422
        %v424 = vcombine.high %v402, %v402
        %v425 = vcombine.high %v409, %v409
        %v426 = vcombine.high %v416, %v416
        %v427 = vcombine.high %v423, %v423
        %v564 = vunpack.c.l.b16 %v250
        %v565 = vunpack.c.l.b16 %v251
        %v566 = vunpack.c.l.b16 %v252
        %v567 = vunpack.c.l.b16 %v253
        %v568 = vunpack.c.l.b16 %v254
        %v569 = vunpack.c.l.b16 %v255
        %v570 = vunpack.c.l.b16 %v256
        %v571 = vunpack.c.l.b16 %v257
        %v572 = vunpack.c.l.b16 %v258
        %v573 = vunpack.c.l.b16 %v259
        %v574 = vunpack.c.l.b16 %v260
        %v575 = vunpack.c.l.b16 %v261
        %v576 = vunpack.c.l.b16 %v262
        %v577 = vunpack.c.l.b16 %v263
        %v578 = vunpack.c.l.b16 %v264
        %v579 = vunpack.c.l.b16 %v265
        %v580 = vunpack.c.l.b16 %v266
        %v581 = vunpack.c.l.b16 %v267
        %v582 = vunpack.c.l.b16 %v268
        %v583 = vunpack.c.l.b16 %v269
        %v584 = vunpack.c.l.b16 %v270
        %v585 = vunpack.c.l.b16 %v271
        %v586 = vunpack.c.l.b16 %v272
        %v587 = vunpack.c.l.b16 %v273
        %v588 = vunpack.c.l.b16 %v274
        %v589 = vunpack.c.l.b16 %v275
        %v590 = vunpack.c.l.b16 %v276
        %v591 = vunpack.c.l.b16 %v277
        %v592 = vunpack.c.l.b16 %v278
        %v593 = vunpack.c.l.b16 %v279
        %v594 = vunpack.c.l.b16 %v280
        %v595 = vunpack.c.l.b16 %v281
        %v596 = vunpack.c.l.b16 %v282
        %v597 = vunpack.c.l.b16 %v283
        %v598 = vunpack.c.l.b16 %v284
        %v599 = vunpack.c.l.b16 %v285
        %v600 = vunpack.c.l.b16 %v286
        %v601 = vunpack.c.l.b16 %v287
        %v602 = vunpack.c.l.b16 %v288
        %v603 = vunpack.c.l.b16 %v289
        %v604 = vunpack.c.l.b16 %v290
        %v605 = vunpack.c.l.b16 %v291
        %v606 = vunpack.c.l.b16 %v292
        %v607 = vunpack.c.l.b16 %v293
        %v608 = vunpack.c.l.b16 %v294
        %v609 = vunpack.c.l.b16 %v295
        %v610 = vunpack.c.l.b16 %v296
        %v611 = vunpack.c.l.b16 %v297
        %v612 = vunpack.c.l.b16 %v298
        %v613 = vunpack.c.l.b16 %v299
        %v614 = vunpack.c.l.b16 %v300
        %v615 = vunpack.c.l.b16 %v301
        %v616 = vunpack.c.l.b16 %v302
        %v617 = vunpack.c.l.b16 %v303
        %v618 = vunpack.c.l.b16 %v304
        %v619 = vunpack.c.l.b16 %v305
        %v620 = vunpack.c.l.b16 %v306
        %v621 = vunpack.c.l.b16 %v307
        %v622 = vunpack.c.l.b16 %v308
        %v623 = vunpack.c.l.b16 %v309
        %v624 = vunpack.c.l.b16 %v310
        %v625 = vunpack.c.l.b16 %v311
        %v626 = vunpack.c.l.b16 %v312
        %v627 = vunpack.c.l.b16 %v313
        %v628 = vunpack.c.l.b16 %v314
        %v629 = vunpack.c.l.b16 %v315
        %v630 = vunpack.c.l.b16 %v316
        %v631 = vunpack.c.l.b16 %v317
        %v632 = vunpack.c.l.b16 %v318
        %v633 = vunpack.c.l.b16 %v319
        %v634 = vunpack.c.l.b16 %v320
        %v635 = vunpack.c.l.b16 %v321
        %v636 = vunpack.c.l.b16 %v322
        %v637 = vunpack.c.l.b16 %v323
        %v638 = vunpack.c.l.b16 %v324
        %v639 = vunpack.c.l.b16 %v325
        %v640 = vunpack.c.l.b16 %v326
        %v641 = vunpack.c.l.b16 %v327
        %v642 = vunpack.c.l.b16 %v328
        %v643 = vunpack.c.l.b16 %v329
        %v644 = vunpack.c.l.b16 %v330
        %v645 = vunpack.c.l.b16 %v331
        %v646 = vunpack.c.l.b16 %v332
        %v647 = vunpack.c.l.b16 %v333
        %v648 = vunpack.c.l.b16 %v334
        %v649 = vunpack.c.l.b16 %v335
        %v650 = vunpack.c.l.b16 %v336
        %v651 = vunpack.c.l.b16 %v337
        %v652 = vunpack.c.l.b16 %v338
        %v653 = vunpack.c.l.b16 %v339
        %v654 = vunpack.c.l.b16 %v340
        %v655 = vunpack.c.l.b16 %v341
        %v656 = vunpack.c.l.b16 %v342
        %v657 = vunpack.c.l.b16 %v343
        %v658 = vunpack.c.l.b16 %v344
        %v659 = vunpack.c.l.b16 %v345
        %v660 = vunpack.c.l.b16 %v346
        %v661 = vunpack.c.l.b16 %v347
        %v662 = vunpack.c.l.b16 %v348
        %v663 = vunpack.c.l.b16 %v349
        %v664 = vunpack.c.l.b16 %v350
        %v665 = vunpack.c.l.b16 %v351
        %v666 = vunpack.c.l.b16 %v352
        %v667 = vunpack.c.l.b16 %v353
        %v668 = vunpack.c.l.b16 %v354
        %v669 = vunpack.c.l.b16 %v355
        %v670 = vunpack.c.l.b16 %v356
        %v671 = vunpack.c.l.b16 %v357
        %v672 = vunpack.c.l.b16 %v358
        %v673 = vunpack.c.l.b16 %v359
        %v674 = vunpack.c.l.b16 %v360
        %v675 = vunpack.c.l.b16 %v361
        %v676 = vunpack.c.l.b16 %v362
        %v677 = vunpack.c.l.b16 %v363
        %v678 = vunpack.c.l.b16 %v364
        %v679 = vunpack.c.l.b16 %v365
        %v680 = vunpack.c.l.b16 %v366
        %v681 = vunpack.c.l.b16 %v367
        %v682 = vunpack.c.l.b16 %v368
        %v683 = vunpack.c.l.b16 %v369
        %v684 = vunpack.c.l.b16 %v370
        %v685 = vunpack.c.l.b16 %v371
        %v686 = vunpack.c.l.b16 %v372
        %v687 = vunpack.c.l.b16 %v373
        %v688 = vunpack.c.l.b16 %v374
        %v689 = vunpack.c.l.b16 %v375
        %v690 = vunpack.c.l.b16 %v376
        %v691 = vunpack.c.l.b16 %v377
        %v692 = vpack.c.b16 %v565, %v564
        %v693 = vpack.c.b16 %v567, %v566
        %v694 = vpack.c.b16 %v569, %v568
        %v695 = vpack.c.b16 %v571, %v570
        %v696 = vpack.c.b16 %v573, %v572
        %v697 = vpack.c.b16 %v575, %v574
        %v698 = vpack.c.b16 %v577, %v576
        %v699 = vpack.c.b16 %v579, %v578
        %v700 = vpack.c.b16 %v581, %v580
        %v701 = vpack.c.b16 %v583, %v582
        %v702 = vpack.c.b16 %v585, %v584
        %v703 = vpack.c.b16 %v587, %v586
        %v704 = vpack.c.b16 %v589, %v588
        %v705 = vpack.c.b16 %v591, %v590
        %v706 = vpack.c.b16 %v593, %v592
        %v707 = vpack.c.b16 %v595, %v594
        %v708 = vpack.c.b16 %v597, %v596
        %v709 = vpack.c.b16 %v599, %v598
        %v710 = vpack.c.b16 %v601, %v600
        %v711 = vpack.c.b16 %v603, %v602
        %v712 = vpack.c.b16 %v605, %v604
        %v713 = vpack.c.b16 %v607, %v606
        %v714 = vpack.c.b16 %v609, %v608
        %v715 = vpack.c.b16 %v611, %v610
        %v716 = vpack.c.b16 %v613, %v612
        %v717 = vpack.c.b16 %v615, %v614
        %v718 = vpack.c.b16 %v617, %v616
        %v719 = vpack.c.b16 %v619, %v618
        %v720 = vpack.c.b16 %v621, %v620
        %v721 = vpack.c.b16 %v623, %v622
        %v722 = vpack.c.b16 %v625, %v624
        %v723 = vpack.c.b16 %v627, %v626
        %v724 = vpack.c.b16 %v629, %v628
        %v725 = vpack.c.b16 %v631, %v630
        %v726 = vpack.c.b16 %v633, %v632
        %v727 = vpack.c.b16 %v635, %v634
        %v728 = vpack.c.b16 %v637, %v636
        %v729 = vpack.c.b16 %v639, %v638
        %v730 = vpack.c.b16 %v641, %v640
        %v731 = vpack.c.b16 %v643, %v642
        %v732 = vpack.c.b16 %v645, %v644
        %v733 = vpack.c.b16 %v647, %v646
        %v734 = vpack.c.b16 %v649, %v648
        %v735 = vpack.c.b16 %v651, %v650
        %v736 = vpack.c.b16 %v653, %v652
        %v737 = vpack.c.b16 %v655, %v654
        %v738 = vpack.c.b16 %v657, %v656
        %v739 = vpack.c.b16 %v659, %v658
        %v740 = vpack.c.b16 %v661, %v660
        %v741 = vpack.c.b16 %v663, %v662
        %v742 = vpack.c.b16 %v665, %v664
        %v743 = vpack.c.b16 %v667, %v666
        %v744 = vpack.c.b16 %v669, %v668
        %v745 = vpack.c.b16 %v671, %v670
        %v746 = vpack.c.b16 %v673, %v672
        %v747 = vpack.c.b16 %v675, %v674
        %v748 = vpack.c.b16 %v677, %v676
        %v749 = vpack.c.b16 %v679, %v678
        %v750 = vpack.c.b16 %v681, %v680
        %v751 = vpack.c.b16 %v683, %v682
        %v752 = vpack.c.b16 %v685, %v684
        %v753 = vpack.c.b16 %v687, %v686
        %v754 = vpack.c.b16 %v689, %v688
        %v755 = vpack.c.b16 %v691, %v690
        %820 = vmatprep.subr.bf16.mxu0 0
        %821 = vmatpush1.bf16.msra.mxu0 %v692
        %822 = vmatprep.subr.bf16.mxu0 0
        %823 = vmatpush1.bf16.msra.mxu0 %v693
        %824 = vmatprep.subr.bf16.mxu0 0
        %825 = vmatpush1.bf16.msra.mxu0 %v694
        %826 = vmatprep.subr.bf16.mxu0 0
        %827 = vmatpush1.bf16.msra.mxu0 %v695
        %828 = vmatprep.subr.bf16.mxu0 0
        %829 = vmatpush1.bf16.msra.mxu0 %v696
        %830 = vmatprep.subr.bf16.mxu0 0
        %831 = vmatpush1.bf16.msra.mxu0 %v697
        %832 = vmatprep.subr.bf16.mxu0 0
        %833 = vmatpush1.bf16.msra.mxu0 %v698
        %834 = vmatprep.subr.bf16.mxu0 0
        %835 = vmatpush1.bf16.msra.mxu0 %v699
        %836 = vmatprep.subr.bf16.mxu0 0
        %837 = vmatpush1.bf16.msra.mxu0 %v700
        %838 = vmatprep.subr.bf16.mxu0 0
        %839 = vmatpush1.bf16.msra.mxu0 %v701
        %840 = vmatprep.subr.bf16.mxu0 0
        %841 = vmatpush1.bf16.msra.mxu0 %v702
        %842 = vmatprep.subr.bf16.mxu0 0
        %843 = vmatpush1.bf16.msra.mxu0 %v703
        %844 = vmatprep.subr.bf16.mxu0 0
        %845 = vmatpush1.bf16.msra.mxu0 %v704
        %846 = vmatprep.subr.bf16.mxu0 0
        %847 = vmatpush1.bf16.msra.mxu0 %v705
        %848 = vmatprep.subr.bf16.mxu0 0
        %849 = vmatpush1.bf16.msra.mxu0 %v706
        %850 = vmatprep.subr.bf16.mxu0 0
        %851 = vmatpush1.bf16.msra.mxu0 %v707
        %852 = vmatprep.mubr.bf16.mxu0 %v416
        %853 = vmatmul.mubr.bf16.gmra.mrb[0].mxu0 %v402
        %v854 = vpop.f32.mrb[0].mxu0
        %v855 = vadd.f32 0.0, %v854
        %v856 = vpop.f32.mrb[0].mxu0
        %v857 = vpop.f32.mrb[0].mxu0
        %v858 = vpop.f32.mrb[0].mxu0
        %859 = vdwg.mxu0
        %860 = vmatprep.subr.bf16.mxu0 0
        %861 = vmatpush1.bf16.msra.mxu0 %v708
        %862 = vmatprep.subr.bf16.mxu0 0
        %863 = vmatpush1.bf16.msra.mxu0 %v709
        %864 = vmatprep.subr.bf16.mxu0 0
        %865 = vmatpush1.bf16.msra.mxu0 %v710
        %866 = vmatprep.subr.bf16.mxu0 0
        %867 = vmatpush1.bf16.msra.mxu0 %v711
        %868 = vmatprep.subr.bf16.mxu0 0
        %869 = vmatpush1.bf16.msra.mxu0 %v712
        %870 = vmatprep.subr.bf16.mxu0 0
        %871 = vmatpush1.bf16.msra.mxu0 %v713
        %872 = vmatprep.subr.bf16.mxu0 0
        %873 = vmatpush1.bf16.msra.mxu0 %v714
        %874 = vmatprep.subr.bf16.mxu0 0
        %875 = vmatpush1.bf16.msra.mxu0 %v715
        %876 = vmatprep.subr.bf16.mxu0 0
        %877 = vmatpush1.bf16.msra.mxu0 %v716
        %878 = vmatprep.subr.bf16.mxu0 0
        %879 = vmatpush1.bf16.msra.mxu0 %v717
        %880 = vmatprep.subr.bf16.mxu0 0
        %881 = vmatpush1.bf16.msra.mxu0 %v718
        %882 = vmatprep.subr.bf16.mxu0 0
        %883 = vmatpush1.bf16.msra.mxu0 %v719
        %884 = vmatprep.subr.bf16.mxu0 0
        %885 = vmatpush1.bf16.msra.mxu0 %v720
        %886 = vmatprep.subr.bf16.mxu0 0
        %887 = vmatpush1.bf16.msra.mxu0 %v721
        %888 = vmatprep.subr.bf16.mxu0 0
        %889 = vmatpush1.bf16.msra.mxu0 %v722
        %890 = vmatprep.subr.bf16.mxu0 0
        %891 = vmatpush1.bf16.msra.mxu0 %v723
        %892 = vmatprep.mubr.bf16.mxu0 %v426
        %893 = vmatmul.mubr.bf16.gmra.mrb[0].mxu0 %v424
        %v894 = vpop.f32.mrb[0].mxu0
        %v895 = vadd.f32 %v855, %v894
        %v896 = vpop.f32.mrb[0].mxu0
        %v897 = vpop.f32.mrb[0].mxu0
        %v898 = vpop.f32.mrb[0].mxu0
        %899 = vdwg.mxu0
        %900 = vmatprep.subr.bf16.mxu0 0
        %901 = vmatpush1.bf16.msra.mxu0 %v724
        %902 = vmatprep.subr.bf16.mxu0 0
        %903 = vmatpush1.bf16.msra.mxu0 %v725
        %904 = vmatprep.subr.bf16.mxu0 0
        %905 = vmatpush1.bf16.msra.mxu0 %v726
        %906 = vmatprep.subr.bf16.mxu0 0
        %907 = vmatpush1.bf16.msra.mxu0 %v727
        %908 = vmatprep.subr.bf16.mxu0 0
        %909 = vmatpush1.bf16.msra.mxu0 %v728
        %910 = vmatprep.subr.bf16.mxu0 0
        %911 = vmatpush1.bf16.msra.mxu0 %v729
        %912 = vmatprep.subr.bf16.mxu0 0
        %913 = vmatpush1.bf16.msra.mxu0 %v730
        %914 = vmatprep.subr.bf16.mxu0 0
        %915 = vmatpush1.bf16.msra.mxu0 %v731
        %916 = vmatprep.subr.bf16.mxu0 0
        %917 = vmatpush1.bf16.msra.mxu0 %v732
        %918 = vmatprep.subr.bf16.mxu0 0
        %919 = vmatpush1.bf16.msra.mxu0 %v733
        %920 = vmatprep.subr.bf16.mxu0 0
        %921 = vmatpush1.bf16.msra.mxu0 %v734
        %922 = vmatprep.subr.bf16.mxu0 0
        %923 = vmatpush1.bf16.msra.mxu0 %v735
        %924 = vmatprep.subr.bf16.mxu0 0
        %925 = vmatpush1.bf16.msra.mxu0 %v736
        %926 = vmatprep.subr.bf16.mxu0 0
        %927 = vmatpush1.bf16.msra.mxu0 %v737
        %928 = vmatprep.subr.bf16.mxu0 0
        %929 = vmatpush1.bf16.msra.mxu0 %v738
        %930 = vmatprep.subr.bf16.mxu0 0
        %931 = vmatpush1.bf16.msra.mxu0 %v739
        %932 = vmatprep.mubr.bf16.mxu0 %v423
        %933 = vmatmul.mubr.bf16.gmra.mrb[0].mxu0 %v409
        %v934 = vpop.f32.mrb[0].mxu0
        %v935 = vadd.f32 %v895, %v934
        %v936 = vpop.f32.mrb[0].mxu0
        %v937 = vpop.f32.mrb[0].mxu0
        %v938 = vpop.f32.mrb[0].mxu0
        %939 = vdwg.mxu0
        %940 = vmatprep.subr.bf16.mxu0 0
        %941 = vmatpush1.bf16.msra.mxu0 %v740
        %942 = vmatprep.subr.bf16.mxu0 0
        %943 = vmatpush1.bf16.msra.mxu0 %v741
        %944 = vmatprep.subr.bf16.mxu0 0
        %945 = vmatpush1.bf16.msra.mxu0 %v742
        %946 = vmatprep.subr.bf16.mxu0 0
        %947 = vmatpush1.bf16.msra.mxu0 %v743
        %948 = vmatprep.subr.bf16.mxu0 0
        %949 = vmatpush1.bf16.msra.mxu0 %v744
        %950 = vmatprep.subr.bf16.mxu0 0
        %951 = vmatpush1.bf16.msra.mxu0 %v745
        %952 = vmatprep.subr.bf16.mxu0 0
        %953 = vmatpush1.bf16.msra.mxu0 %v746
        %954 = vmatprep.subr.bf16.mxu0 0
        %955 = vmatpush1.bf16.msra.mxu0 %v747
        %956 = vmatprep.subr.bf16.mxu0 0
        %957 = vmatpush1.bf16.msra.mxu0 %v748
        %958 = vmatprep.subr.bf16.mxu0 0
        %959 = vmatpush1.bf16.msra.mxu0 %v749
        %960 = vmatprep.subr.bf16.mxu0 0
        %961 = vmatpush1.bf16.msra.mxu0 %v750
        %962 = vmatprep.subr.bf16.mxu0 0
        %963 = vmatpush1.bf16.msra.mxu0 %v751
        %964 = vmatprep.subr.bf16.mxu0 0
        %965 = vmatpush1.bf16.msra.mxu0 %v752
        %966 = vmatprep.subr.bf16.mxu0 0
        %967 = vmatpush1.bf16.msra.mxu0 %v753
        %968 = vmatprep.subr.bf16.mxu0 0
        %969 = vmatpush1.bf16.msra.mxu0 %v754
        %970 = vmatprep.subr.bf16.mxu0 0
        %971 = vmatpush1.bf16.msra.mxu0 %v755
        %972 = vmatprep.mubr.bf16.mxu0 %v427
        %973 = vmatmul.mubr.bf16.gmra.mrb[0].mxu0 %v425
        %v974 = vpop.f32.mrb[0].mxu0
        %v975 = vadd.f32 %v935, %v974
        %v976 = vpop.f32.mrb[0].mxu0
        %v977 = vpop.f32.mrb[0].mxu0
        %v978 = vpop.f32.mrb[0].mxu0
        %979 = vdwg.mxu0
        %v980 = vadd.f32 %v248, %v975
        %981 = vst [vmem:[%s231] sm:$0x3] %v980
        // Predicated region
        $region41: #{head_fc_forward.1} parent=31 // pred_check
          %p982 = pneg %p243
        $region42: #{head_fc_forward.1} parent=31 // pred_check_branch
          %984 = sbr.rel (%p982) target = $region44
        $region43: #{head_fc_forward.1} parent=31 // pred_region
          %v985 = vld [vmem:[%s241] sm:$0x3]
          %v986 = vld [vmem:[%s231] sm:$0x3]
          %v987 = vlaneseq
          %v988 = vshrl.u32 %v987, 7
          %v989 = vsub.s32 0, %v988
          %v990 = vrot.slane %v985, %v989
          %v991 = vmul.f32 %v986, %v990
          %v992 = vlaneseq
          %v993 = vshrl.u32 %v992, 7
          %v994 = vsub.s32 1, %v993
          %v995 = vrot.slane %v985, %v994
          %v996 = vadd.f32 %v991, %v995
          %997 = vst [vmem:[%s231] sm:$0x3] %v996
        $region44: #{head_fc_forward.1} parent=31 // pred_fallthru
          _
        %s998 = sand.u32 %s120, 1
        %s999 = scalar_lea.sflag [#allocation4], %s998
        %s1000 = sand.u32 %s120, 1
        %s1001 = smul.addr %s1000, 2
        %s1002 = scalar_lea.vmem [#allocation5], %s1001
        // Predicated region
        $region45: #{head_fc_forward.1} parent=31 // pred_check
          %p1003 = pneg %p130
        $region46: #{head_fc_forward.1} parent=31 // pred_check_branch
          %1005 = sbr.rel (%p1003) target = $region48
        $region47: #{head_fc_forward.1} parent=31 // pred_region
          %s1007 = ssub.s32 32, 32
          %1008 = vsyncadd %s999, %s1007
          %s1009 = smul.addr %s24, 32
          %s1010 = scalar_lea.hbm %s3, %s1009
          %s1012 = sshll.u32 %s1002, 4
          %s1013 = int_to_ptr.vmem [resolvable:$true] %s1012
          %1015 = dma.vmem_to_hbm [thread:$0]  %s1013, 32, %s1010, %s999
        $region48: #{head_fc_forward.1} parent=31 // pred_fallthru
          _
      $region32: #{head_fc_forward.1} parent=5 // pred_fallthru
        _
      %p1016 = scmp.le.s32.totalorder 2, %s15
      // Predicated region
      $region49: #{head_fc_forward.1} parent=5 // pred_check
        %p1017 = pneg %p1016
      $region50: #{head_fc_forward.1} parent=5 // pred_check_branch
        %1019 = sbr.rel (%p1017) target = $region52
      $region51: #{head_fc_forward.1} parent=5 // pred_region
        %s1020 = ssub.s32 %s15, 2
        // Predicated region
        $region53: #{head_fc_forward.1} parent=51 // pred_check
          %p1021 = pneg %p136
        $region54: #{head_fc_forward.1} parent=51 // pred_check_branch
          %1023 = sbr.rel (%p1021) target = $region56
        $region55: #{head_fc_forward.1} parent=51 // pred_region
          %s1024 = sand.u32 %s121, 1
          %s1025 = scalar_lea.sflag [#allocation4], %s1024
          %s1026 = sand.u32 %s121, 1
          %s1027 = smul.addr %s1026, 2
          %s1028 = scalar_lea.vmem [#allocation5], %s1027
          %1029 = dma.done %s1025, 32
        $region56: #{head_fc_forward.1} parent=51 // pred_fallthru
          _
      $region52: #{head_fc_forward.1} parent=5 // pred_fallthru
        _
    $region6: #{head_fc_forward.1} parent=1 // loop_footer
      %s19 = sadd.s32 1, %s15
    $region7: #{head_fc_forward.1} parent=1 // loop_footer_branch
      %14 = sbr.rel target = $region3
    $region8: #{head_fc_forward.1} parent=1 // loop_exit
      _
    %1030 = vsyncpa [#allocation3], 1
    %s1031 = scalar_lea.sflag [#allocation3], 1
    %1032 = vsyncpa %s1031, 1
    %1033 = vsyncpa [#allocation4], 1
    %s1034 = scalar_lea.sflag [#allocation4], 1
    %1035 = vsyncpa %s1034, 1

</llo_original>
